<compile_context>
chip_gen: v7x
topology: tpu7x:2x2x1
jax: 0.10.0
libtpu: 0.0.40
codegen_flags: <defaults>
</compile_context>

<pallas_src>
import functools

import jax
import jax.numpy as jnp
from jax.experimental import pallas as pl
from jax.experimental.pallas import tpu as pltpu

IN_DIM = 100
K_PAD = 128              # fc1 contraction dim padded to the 128-lane boundary
H1, H2, OUT = 32, 8, 2


def mlp_kernel(x_ref, w1_ref, b1_ref, w2_ref, b2_ref, w3_ref, b3_ref, o_ref):
    # fc1: (32,128)bf16 contracted with (TB,128)bf16 over the last dims
    #      -> (32, TB) f32 (MXU, f32 accumulation; W @ X^T form).
    h1 = jax.lax.dot_general(
        w1_ref[...], x_ref[...],
        dimension_numbers=(((1,), (1,)), ((), ())),
        preferred_element_type=jnp.float32)
    h1 = jnp.maximum(h1 + b1_ref[...], 0.0)        # bias (32,1) lane-broadcast

    # fc2: (8, 32) @ (32, TB) -> (8, TB)
    h2 = jax.lax.dot_general(
        w2_ref[...], h1,
        dimension_numbers=(((1,), (0,)), ((), ())),
        preferred_element_type=jnp.float32)
    h2 = jnp.maximum(h2 + b2_ref[...], 0.0)

    # fc3: (2, 8) @ (8, TB) -> (2, TB)
    logits = jax.lax.dot_general(
        w3_ref[...], h2,
        dimension_numbers=(((1,), (0,)), ((), ())),
        preferred_element_type=jnp.float32)
    logits = logits + b3_ref[...]

    # 2-class softmax == sigmoid of the logit difference: elementwise only,
    # no cross-lane reductions.  (Exact divide kept for tight numerics; could
    # use pl.reciprocal(..., approx=True) to ride the free EUP slot.)
    d = logits[0:1, :] - logits[1:2, :]            # (1, TB)
    p0 = 1.0 / (1.0 + jnp.exp(-d))                 # softmax prob of class 0
    o_ref[0:1, :] = p0
    o_ref[1:2, :] = 1.0 - p0


@functools.partial(jax.jit, static_argnames=("tile_b",))
def mlp_forward(x, params, *, tile_b=1024):
    """x: (..., total % 100 == 0), mirrors torch x.view(-1, 100).
    Returns (B, 2) softmax probabilities."""
    w1, b1, w2, b2, w3, b3 = params        # PyTorch layout: w (out,in), b (out,1)
    x2d = x.reshape(-1, IN_DIM)
    B = x2d.shape[0]

    assert tile_b % 128 == 0
    TB = min(tile_b, pl.cdiv(B, 128) * 128)          # batch tile (lane-dense out)
    B_pad = pl.cdiv(B, TB) * TB                      # pad tail tile
    grid = (B_pad // TB,)

    # Pad batch to a TB multiple and contraction dim to 128; stream as bf16.
    xp = jnp.zeros((B_pad, K_PAD), jnp.bfloat16)
    xp = xp.at[:B, :IN_DIM].set(x2d.astype(jnp.bfloat16))
    w1p = jnp.zeros((H1, K_PAD), jnp.bfloat16)
    w1p = w1p.at[:, :IN_DIM].set(w1.astype(jnp.bfloat16))

    const = lambda shape: pl.BlockSpec(shape, lambda i: (0, 0))  # VMEM-resident

    out_t = pl.pallas_call(
        mlp_kernel,
        out_shape=jax.ShapeDtypeStruct((OUT, B_pad), jnp.float32),
        grid=grid,
        in_specs=[
            pl.BlockSpec((TB, K_PAD), lambda i: (i, 0)),   # x: tiled over batch
            const((H1, K_PAD)), const((H1, 1)),            # w1, b1
            const((H2, H1)),    const((H2, 1)),            # w2, b2
            const((OUT, H2)),   const((OUT, 1)),           # w3, b3
        ],
        out_specs=pl.BlockSpec((OUT, TB), lambda i: (0, i)),
        compiler_params=pltpu.CompilerParams(
            dimension_semantics=("parallel",)),
    )(xp, w1p, b1, w2, b2, w3, b3)

    return out_t[:, :B].T                                  # back to (B, 2)


def init_params(key):
    """PyTorch nn.Linear-style init: U(-1/sqrt(fan_in), 1/sqrt(fan_in))."""
    def linear(key, fan_in, fan_out):
        kw, kb = jax.random.split(key)
        bound = 1.0 / float(fan_in) ** 0.5
        w = jax.random.uniform(kw, (fan_out, fan_in), jnp.float32, -bound, bound)
        b = jax.random.uniform(kb, (fan_out, 1), jnp.float32, -bound, bound)
        return w, b

    k1, k2, k3 = jax.random.split(key, 3)
    w1, b1 = linear(k1, IN_DIM, H1)
    w2, b2 = linear(k2, H1, H2)
    w3, b3 = linear(k3, H2, OUT)
    return (w1, b1, w2, b2, w3, b3)


def mlp_reference(x, params):
    """Pure-JAX reference (mirrors the kernel's bf16 streaming of fc1 operands)."""
    w1, b1, w2, b2, w3, b3 = params
    x2d = x.reshape(-1, IN_DIM)
    xb = x2d.astype(jnp.bfloat16).astype(jnp.float32)
    w1b = w1.astype(jnp.bfloat16).astype(jnp.float32)
    h1 = jnp.maximum(xb @ w1b.T + b1.T, 0.0)
    h2 = jnp.maximum(h1 @ w2.T + b2.T, 0.0)
    logits = h2 @ w3.T + b3.T
    return jax.nn.softmax(logits, axis=-1)


if __name__ == "__main__":
    key = jax.random.PRNGKey(0)
    kx, kp = jax.random.split(key)

    B = 8
    x = jax.random.normal(kx, (B, IN_DIM), jnp.float32)
    params = init_params(kp)

    out = mlp_forward(x, params)
    out = jax.block_until_ready(out)
    ref = mlp_reference(x, params)

    assert out.shape == (B, 2), out.shape
    assert jnp.allclose(jnp.sum(out, axis=-1), 1.0, atol=1e-5), \
        "softmax rows must sum to 1"
    assert jnp.allclose(out, ref, atol=2e-4, rtol=2e-3), \
        f"mismatch vs reference: max abs err {jnp.max(jnp.abs(out - ref))}"

    print("KERNEL_OK")
</pallas_src>

<mosaic_0001>
module attributes {stable_mosaic.version = 11 : i64} {
  func.func @mlp_kernel(%arg0: i32, %arg1: memref<128x128xbf16, #tpu.memory_space<vmem>>, %arg2: memref<32x128xbf16, #tpu.memory_space<vmem>>, %arg3: memref<32x1xf32, #tpu.memory_space<vmem>>, %arg4: memref<8x32xf32, #tpu.memory_space<vmem>>, %arg5: memref<8x1xf32, #tpu.memory_space<vmem>>, %arg6: memref<2x8xf32, #tpu.memory_space<vmem>>, %arg7: memref<2x1xf32, #tpu.memory_space<vmem>>, %arg8: memref<2x128xf32, #tpu.memory_space<vmem>>) attributes {dimension_semantics = [#tpu.dimension_semantics<parallel>], iteration_bounds = array<i64: 1>, scalar_prefetch = 0 : i64, scratch_operands = 0 : i64, tpu.core_type = #tpu.core_type<tc>, window_params = [{transform_indices = @transform_0, window_bounds = array<i64: 128, 128>}, {pipeline_mode = #tpu.pipeline_mode<synchronous>, transform_indices = @transform_1, window_bounds = array<i64: 32, 128>}, {pipeline_mode = #tpu.pipeline_mode<synchronous>, transform_indices = @transform_2, window_bounds = array<i64: 32, 1>}, {pipeline_mode = #tpu.pipeline_mode<synchronous>, transform_indices = @transform_3, window_bounds = array<i64: 8, 32>}, {pipeline_mode = #tpu.pipeline_mode<synchronous>, transform_indices = @transform_4, window_bounds = array<i64: 8, 1>}, {pipeline_mode = #tpu.pipeline_mode<synchronous>, transform_indices = @transform_5, window_bounds = array<i64: 2, 8>}, {pipeline_mode = #tpu.pipeline_mode<synchronous>, transform_indices = @transform_6, window_bounds = array<i64: 2, 1>}, {transform_indices = @transform_7, window_bounds = array<i64: 2, 128>}]} {
    %c0 = arith.constant 0 : index
    %c0_0 = arith.constant 0 : index
    %0 = vector.load %arg2[%c0, %c0_0] : memref<32x128xbf16, #tpu.memory_space<vmem>>, vector<32x128xbf16>
    %c0_1 = arith.constant 0 : index
    %c0_2 = arith.constant 0 : index
    %1 = vector.load %arg1[%c0_1, %c0_2] : memref<128x128xbf16, #tpu.memory_space<vmem>>, vector<128x128xbf16>
    %cst = arith.constant dense<0.000000e+00> : vector<32x128xf32>
    %2 = tpu.matmul %0, %1, %cst {dimension_numbers = #tpu.dot_dimension_numbers<[1], [1], [0], [0], [0, 0, 1, 0], [], []>} : vector<32x128xbf16>, vector<128x128xbf16>, vector<32x128xf32> -> vector<32x128xf32>
    %c0_3 = arith.constant 0 : index
    %c0_4 = arith.constant 0 : index
    %3 = vector.load %arg3[%c0_3, %c0_4] : memref<32x1xf32, #tpu.memory_space<vmem>>, vector<32x1xf32>
    %4 = vector.broadcast %3 : vector<32x1xf32> to vector<32x128xf32>
    %5 = arith.addf %2, %4 : vector<32x128xf32>
    %cst_5 = arith.constant 0.000000e+00 : f32
    %6 = vector.broadcast %cst_5 : f32 to vector<32x128xf32>
    %7 = arith.maximumf %5, %6 : vector<32x128xf32>
    %c0_6 = arith.constant 0 : index
    %c0_7 = arith.constant 0 : index
    %8 = vector.load %arg4[%c0_6, %c0_7] : memref<8x32xf32, #tpu.memory_space<vmem>>, vector<8x32xf32>
    %cst_8 = arith.constant dense<0.000000e+00> : vector<8x128xf32>
    %9 = tpu.matmul %8, %7, %cst_8 {dimension_numbers = #tpu.dot_dimension_numbers<[1], [0], [0], [1], [0, 0, 1, 1], [], []>} : vector<8x32xf32>, vector<32x128xf32>, vector<8x128xf32> -> vector<8x128xf32>
    %c0_9 = arith.constant 0 : index
    %c0_10 = arith.constant 0 : index
    %10 = vector.load %arg5[%c0_9, %c0_10] : memref<8x1xf32, #tpu.memory_space<vmem>>, vector<8x1xf32>
    %11 = vector.broadcast %10 : vector<8x1xf32> to vector<8x128xf32>
    %12 = arith.addf %9, %11 : vector<8x128xf32>
    %cst_11 = arith.constant 0.000000e+00 : f32
    %13 = vector.broadcast %cst_11 : f32 to vector<8x128xf32>
    %14 = arith.maximumf %12, %13 : vector<8x128xf32>
    %c0_12 = arith.constant 0 : index
    %c0_13 = arith.constant 0 : index
    %15 = vector.load %arg6[%c0_12, %c0_13] : memref<2x8xf32, #tpu.memory_space<vmem>>, vector<2x8xf32>
    %cst_14 = arith.constant dense<0.000000e+00> : vector<2x128xf32>
    %16 = tpu.matmul %15, %14, %cst_14 {dimension_numbers = #tpu.dot_dimension_numbers<[1], [0], [0], [1], [0, 0, 1, 1], [], []>} : vector<2x8xf32>, vector<8x128xf32>, vector<2x128xf32> -> vector<2x128xf32>
    %c0_15 = arith.constant 0 : index
    %c0_16 = arith.constant 0 : index
    %17 = vector.load %arg7[%c0_15, %c0_16] : memref<2x1xf32, #tpu.memory_space<vmem>>, vector<2x1xf32>
    %18 = vector.broadcast %17 : vector<2x1xf32> to vector<2x128xf32>
    %19 = arith.addf %16, %18 : vector<2x128xf32>
    %20 = vector.extract_strided_slice %19 {offsets = [0, 0], sizes = [1, 128], strides = [1, 1]} : vector<2x128xf32> to vector<1x128xf32>
    %21 = vector.extract_strided_slice %19 {offsets = [1, 0], sizes = [1, 128], strides = [1, 1]} : vector<2x128xf32> to vector<1x128xf32>
    %22 = arith.subf %20, %21 : vector<1x128xf32>
    %cst_17 = arith.constant 0.000000e+00 : f32
    %23 = vector.broadcast %cst_17 : f32 to vector<1x128xf32>
    %24 = arith.subf %23, %22 : vector<1x128xf32>
    %25 = math.exp %24 : vector<1x128xf32>
    %cst_18 = arith.constant 1.000000e+00 : f32
    %26 = vector.broadcast %cst_18 : f32 to vector<1x128xf32>
    %27 = arith.addf %26, %25 : vector<1x128xf32>
    %cst_19 = arith.constant 1.000000e+00 : f32
    %28 = vector.broadcast %cst_19 : f32 to vector<1x128xf32>
    %29 = arith.divf %28, %27 : vector<1x128xf32>
    %c0_20 = arith.constant 0 : index
    %c0_21 = arith.constant 0 : index
    %30 = vector.load %arg8[%c0_20, %c0_21] : memref<2x128xf32, #tpu.memory_space<vmem>>, vector<1x128xf32>
    tpu.vector_store %arg8[%c0_20, %c0_21], %29 {strides = array<i32>} : memref<2x128xf32, #tpu.memory_space<vmem>>, vector<1x128xf32>,
    %cst_22 = arith.constant 1.000000e+00 : f32
    %31 = vector.broadcast %cst_22 : f32 to vector<1x128xf32>
    %32 = arith.subf %31, %29 : vector<1x128xf32>
    %c1 = arith.constant 1 : index
    %c0_23 = arith.constant 0 : index
    %33 = vector.load %arg8[%c1, %c0_23] : memref<2x128xf32, #tpu.memory_space<vmem>>, vector<1x128xf32>
    tpu.vector_store %arg8[%c1, %c0_23], %32 {strides = array<i32>} : memref<2x128xf32, #tpu.memory_space<vmem>>, vector<1x128xf32>,
    return
  }
  func.func @transform_0(%arg0: i32) -> (i32, i32) {
    %c0_i32 = arith.constant 0 : i32
    %c0_i32_0 = arith.constant 0 : i32
    return %arg0, %c0_i32 : i32, i32
  }
  func.func @transform_1(%arg0: i32) -> (i32, i32) {
    %c0_i32 = arith.constant 0 : i32
    %c0_i32_0 = arith.constant 0 : i32
    %c0_i32_1 = arith.constant 0 : i32
    return %c0_i32, %c0_i32_0 : i32, i32
  }
  func.func @transform_2(%arg0: i32) -> (i32, i32) {
    %c0_i32 = arith.constant 0 : i32
    %c0_i32_0 = arith.constant 0 : i32
    %c0_i32_1 = arith.constant 0 : i32
    return %c0_i32, %c0_i32_0 : i32, i32
  }
  func.func @transform_3(%arg0: i32) -> (i32, i32) {
    %c0_i32 = arith.constant 0 : i32
    %c0_i32_0 = arith.constant 0 : i32
    %c0_i32_1 = arith.constant 0 : i32
    return %c0_i32, %c0_i32_0 : i32, i32
  }
  func.func @transform_4(%arg0: i32) -> (i32, i32) {
    %c0_i32 = arith.constant 0 : i32
    %c0_i32_0 = arith.constant 0 : i32
    %c0_i32_1 = arith.constant 0 : i32
    return %c0_i32, %c0_i32_0 : i32, i32
  }
  func.func @transform_5(%arg0: i32) -> (i32, i32) {
    %c0_i32 = arith.constant 0 : i32
    %c0_i32_0 = arith.constant 0 : i32
    %c0_i32_1 = arith.constant 0 : i32
    return %c0_i32, %c0_i32_0 : i32, i32
  }
  func.func @transform_6(%arg0: i32) -> (i32, i32) {
    %c0_i32 = arith.constant 0 : i32
    %c0_i32_0 = arith.constant 0 : i32
    %c0_i32_1 = arith.constant 0 : i32
    return %c0_i32, %c0_i32_0 : i32, i32
  }
  func.func @transform_7(%arg0: i32) -> (i32, i32) {
    %c0_i32 = arith.constant 0 : i32
    %c0_i32_0 = arith.constant 0 : i32
    return %c0_i32, %arg0 : i32, i32
  }
}

</mosaic_0001>

<llo_original>
// kernel: mlp_forward.1
$region0: #{mlp_forward.1}
  #allocation0 [shape = 'u32[]', space=smem, size = 0x4, offset = 0x4, fixed_abs, tag = 'smem constant byte address 0x4 - core index']
  #allocation1 [shape = 'u32[144,128]{1,0:T(1,128)}', space=vmem, size = 0x12000, scoped, tag = 'internal scratch']
  %s0 = inlined_call_operand.vmem [shape: bf16[128,128], index: 0, kind: input, shape index: {}]
  %s1 = inlined_call_operand.vmem [shape: bf16[32,128], index: 1, kind: input, shape index: {}]
  %s2 = inlined_call_operand.vmem [shape: f32[32,1], index: 2, kind: input, shape index: {}]
  %s3 = inlined_call_operand.vmem [shape: f32[8,32], index: 3, kind: input, shape index: {}]
  %s4 = inlined_call_operand.vmem [shape: f32[8,1], index: 4, kind: input, shape index: {}]
  %s5 = inlined_call_operand.vmem [shape: f32[2,8], index: 5, kind: input, shape index: {}]
  %s6 = inlined_call_operand.vmem [shape: f32[2,1], index: 6, kind: input, shape index: {}]
  %s7 = inlined_call_operand.vmem [shape: f32[2,128], index: 7, kind: output, shape index: {}]
  %s8 = sld [smem:[#allocation0]]
  $region38: #{mlp_forward.1} parent=0
    _
  %s10 = ssub.s32 1, %s8
  %s11 = scalar_select 0, %s10, %s8
  // Predicated region
  $region2: #{mlp_forward.1} parent=0 // pred_check
    _
  $region3: #{mlp_forward.1} parent=0 // pred_check_branch
    %13 = sbr.rel (0) target = $region5
  $region4: #{mlp_forward.1} parent=0 // pred_region
    _
  $region5: #{mlp_forward.1} parent=0 // pred_fallthru
    _
  // Predicated region
  $region6: #{mlp_forward.1} parent=0 // pred_check
    _
  $region7: #{mlp_forward.1} parent=0 // pred_check_branch
    %15 = sbr.rel (0) target = $region9
  $region8: #{mlp_forward.1} parent=0 // pred_region
    _
  $region9: #{mlp_forward.1} parent=0 // pred_fallthru
    _
  // Predicated region
  $region10: #{mlp_forward.1} parent=0 // pred_check
    _
  $region11: #{mlp_forward.1} parent=0 // pred_check_branch
    %17 = sbr.rel (0) target = $region13
  $region12: #{mlp_forward.1} parent=0 // pred_region
    _
  $region13: #{mlp_forward.1} parent=0 // pred_fallthru
    _
  // Predicated region
  $region14: #{mlp_forward.1} parent=0 // pred_check
    _
  $region15: #{mlp_forward.1} parent=0 // pred_check_branch
    %19 = sbr.rel (0) target = $region17
  $region16: #{mlp_forward.1} parent=0 // pred_region
    _
  $region17: #{mlp_forward.1} parent=0 // pred_fallthru
    _
  // Predicated region
  $region18: #{mlp_forward.1} parent=0 // pred_check
    _
  $region19: #{mlp_forward.1} parent=0 // pred_check_branch
    %21 = sbr.rel (0) target = $region21
  $region20: #{mlp_forward.1} parent=0 // pred_region
    _
  $region21: #{mlp_forward.1} parent=0 // pred_fallthru
    _
  // Predicated region
  $region22: #{mlp_forward.1} parent=0 // pred_check
    _
  $region23: #{mlp_forward.1} parent=0 // pred_check_branch
    %23 = sbr.rel (0) target = $region25
  $region24: #{mlp_forward.1} parent=0 // pred_region
    _
  $region25: #{mlp_forward.1} parent=0 // pred_fallthru
    _
  // Predicated region
  $region26: #{mlp_forward.1} parent=0 // pred_check
    _
  $region27: #{mlp_forward.1} parent=0 // pred_check_branch
    %25 = sbr.rel (0) target = $region29
  $region28: #{mlp_forward.1} parent=0 // pred_region
    _
  $region29: #{mlp_forward.1} parent=0 // pred_fallthru
    _
  %v27 = vld [vmem:[%s1] sm:$0xf]
  %v28 = vld [vmem:[%s1 + $0x4] sm:$0xf]
  %v29 = vld [vmem:[%s1 + $0x8] sm:$0xf]
  %v30 = vld [vmem:[%s1 + $0xc] sm:$0xf]
  %v31 = vld [vmem:[%s0] sm:$0xf]
  %v32 = vld [vmem:[%s0 + $0x4] sm:$0xf]
  %v33 = vld [vmem:[%s0 + $0x8] sm:$0xf]
  %v34 = vld [vmem:[%s0 + $0xc] sm:$0xf]
  %v35 = vld [vmem:[%s0 + $0x10] sm:$0xf]
  %v36 = vld [vmem:[%s0 + $0x14] sm:$0xf]
  %v37 = vld [vmem:[%s0 + $0x18] sm:$0xf]
  %v38 = vld [vmem:[%s0 + $0x1c] sm:$0xf]
  %v39 = vld [vmem:[%s0 + $0x20] sm:$0xf]
  %v40 = vld [vmem:[%s0 + $0x24] sm:$0xf]
  %v41 = vld [vmem:[%s0 + $0x28] sm:$0xf]
  %v42 = vld [vmem:[%s0 + $0x2c] sm:$0xf]
  %v43 = vld [vmem:[%s0 + $0x30] sm:$0xf]
  %v44 = vld [vmem:[%s0 + $0x34] sm:$0xf]
  %v45 = vld [vmem:[%s0 + $0x38] sm:$0xf]
  %v46 = vld [vmem:[%s0 + $0x3c] sm:$0xf]
  %v47 = vld [vmem:[%s2] sm:$0xff]
  %v48 = vld [vmem:[%s2 + $0x8] sm:$0xff]
  %v49 = vld [vmem:[%s2 + $0x10] sm:$0xff]
  %v50 = vld [vmem:[%s2 + $0x18] sm:$0xff]
  %52 = vset.pattern.permute.xlu0 0
  %53 = vperm.xlu0 %52, %v47
  %v54 = vpop.permute.xlu0 %53
  %57 = vset.pattern.permute.xlu0 0
  %58 = vperm.xlu0 %57, %v48
  %v59 = vpop.permute.xlu0 %58
  %62 = vset.pattern.permute.xlu0 0
  %63 = vperm.xlu0 %62, %v49
  %v64 = vpop.permute.xlu0 %63
  %67 = vset.pattern.permute.xlu0 0
  %68 = vperm.xlu0 %67, %v50
  %v69 = vpop.permute.xlu0 %68
  %v75 = vunpack.c.l.b16 %v27
  %v76 = vunpack.c.l.b16 %v28
  %v77 = vunpack.c.l.b16 %v29
  %v78 = vunpack.c.l.b16 %v30
  %v79 = vpack.c.b16 %v76, %v75
  %v80 = vpack.c.b16 %v78, %v77
  %v99 = vunpack.c.l.b16 %v31
  %v100 = vunpack.c.l.b16 %v32
  %v101 = vunpack.c.l.b16 %v33
  %v102 = vunpack.c.l.b16 %v34
  %v103 = vunpack.c.l.b16 %v35
  %v104 = vunpack.c.l.b16 %v36
  %v105 = vunpack.c.l.b16 %v37
  %v106 = vunpack.c.l.b16 %v38
  %v107 = vunpack.c.l.b16 %v39
  %v108 = vunpack.c.l.b16 %v40
  %v109 = vunpack.c.l.b16 %v41
  %v110 = vunpack.c.l.b16 %v42
  %v111 = vunpack.c.l.b16 %v43
  %v112 = vunpack.c.l.b16 %v44
  %v113 = vunpack.c.l.b16 %v45
  %v114 = vunpack.c.l.b16 %v46
  %v115 = vpack.c.b16 %v100, %v99
  %v116 = vpack.c.b16 %v102, %v101
  %v117 = vpack.c.b16 %v104, %v103
  %v118 = vpack.c.b16 %v106, %v105
  %v119 = vpack.c.b16 %v108, %v107
  %v120 = vpack.c.b16 %v110, %v109
  %v121 = vpack.c.b16 %v112, %v111
  %v122 = vpack.c.b16 %v114, %v113
  %131 = vmatprep.subr.bf16.mxu0 0
  %132 = vmatpush1.bf16.xpose.msra.mxu0 %v115
  %133 = vmatprep.subr.bf16.mxu0 0
  %134 = vmatpush1.bf16.xpose.msra.mxu0 %v116
  %135 = vmatprep.subr.bf16.mxu0 0
  %136 = vmatpush1.bf16.xpose.msra.mxu0 %v117
  %137 = vmatprep.subr.bf16.mxu0 0
  %138 = vmatpush1.bf16.xpose.msra.mxu0 %v118
  %139 = vmatprep.subr.bf16.mxu0 0
  %140 = vmatpush1.bf16.xpose.msra.mxu0 %v119
  %141 = vmatprep.subr.bf16.mxu0 0
  %142 = vmatpush1.bf16.xpose.msra.mxu0 %v120
  %143 = vmatprep.subr.bf16.mxu0 0
  %144 = vmatpush1.bf16.xpose.msra.mxu0 %v121
  %145 = vmatprep.subr.bf16.mxu0 0
  %146 = vmatpush1.bf16.xpose.msra.mxu0 %v122
  %147 = vmatprep.subr.bf16.mxu0 0
  %148 = vmatpush1.bf16.xpose.msra.mxu0 0
  %149 = vmatprep.subr.bf16.mxu0 0
  %150 = vmatpush1.bf16.xpose.msra.mxu0 0
  %151 = vmatprep.subr.bf16.mxu0 0
  %152 = vmatpush1.bf16.xpose.msra.mxu0 0
  %153 = vmatprep.subr.bf16.mxu0 0
  %154 = vmatpush1.bf16.xpose.msra.mxu0 0
  %155 = vmatprep.subr.bf16.mxu0 0
  %156 = vmatpush1.bf16.xpose.msra.mxu0 0
  %157 = vmatprep.subr.bf16.mxu0 0
  %158 = vmatpush1.bf16.xpose.msra.mxu0 0
  %159 = vmatprep.subr.bf16.mxu0 0
  %160 = vmatpush1.bf16.xpose.msra.mxu0 0
  %161 = vmatprep.subr.bf16.mxu0 0
  %162 = vmatpush1.bf16.xpose.msra.mxu0 0
  %163 = vmatprep.mubr.bf16.mxu0 0
  %164 = vmatmul.mubr.bf16.gmra.mrb[0].mxu0 %v79
  %v165 = vpop.f32.mrb[0].mxu0
  %v166 = vadd.f32 %v54, %v165
  %v167 = vpop.f32.mrb[0].mxu0
  %v168 = vpop.f32.mrb[0].mxu0
  %v169 = vadd.f32 %v59, %v168
  %v170 = vpop.f32.mrb[0].mxu0
  %171 = vmatprep.mubr.bf16.mxu0 0
  %172 = vmatmul.mubr.bf16.gmra.mrb[0].mxu0 %v80
  %v173 = vpop.f32.mrb[0].mxu0
  %v174 = vadd.f32 %v64, %v173
  %v175 = vpop.f32.mrb[0].mxu0
  %v176 = vpop.f32.mrb[0].mxu0
  %v177 = vadd.f32 %v69, %v176
  %v178 = vpop.f32.mrb[0].mxu0
  %179 = vdwg.mxu0
  %v180 = vmax.f32 %v166, 0.0
  %v181 = vmax.f32 %v169, 0.0
  %v182 = vmax.f32 %v174, 0.0
  %v183 = vmax.f32 %v177, 0.0
  %v184 = vld [vmem:[%s3] sm:$0xff]
  %v185 = vld [vmem:[%s4] sm:$0xff]
  %187 = vset.pattern.permute.xlu0 0
  %188 = vperm.xlu0 %187, %v185
  %v189 = vpop.permute.xlu0 %188
  %vm191 = vcmask 261120
  %v193 = vsel %vm191, %v184, 0
  %195 = vmatprep.subr.mxu0 0.0
  %196 = vmatpush1.msra.mxu0 %v180
  %197 = vmatprep.subr.mxu0 0.0
  %198 = vmatpush1.msra.mxu0 %v181
  %199 = vmatprep.subr.mxu0 0.0
  %200 = vmatpush1.msra.mxu0 %v182
  %201 = vmatprep.subr.mxu0 0.0
  %202 = vmatpush1.msra.mxu0 %v183
  %203 = vmatprep.subr.mxu0 0.0
  %204 = vmatpush1.msra.mxu0 0.0
  %205 = vmatprep.subr.mxu0 0.0
  %206 = vmatpush1.msra.mxu0 0.0
  %207 = vmatprep.subr.mxu0 0.0
  %208 = vmatpush1.msra.mxu0 0.0
  %209 = vmatprep.subr.mxu0 0.0
  %210 = vmatpush1.msra.mxu0 0.0
  %211 = vmatprep.subr.mxu0 0.0
  %212 = vmatpush1.msra.mxu0 0.0
  %213 = vmatprep.subr.mxu0 0.0
  %214 = vmatpush1.msra.mxu0 0.0
  %215 = vmatprep.subr.mxu0 0.0
  %216 = vmatpush1.msra.mxu0 0.0
  %217 = vmatprep.subr.mxu0 0.0
  %218 = vmatpush1.msra.mxu0 0.0
  %219 = vmatprep.subr.mxu0 0.0
  %220 = vmatpush1.msra.mxu0 0.0
  %221 = vmatprep.subr.mxu0 0.0
  %222 = vmatpush1.msra.mxu0 0.0
  %223 = vmatprep.subr.mxu0 0.0
  %224 = vmatpush1.msra.mxu0 0.0
  %225 = vmatprep.subr.mxu0 0.0
  %226 = vmatpush1.msra.mxu0 0.0
  %227 = vmatprep.subr.mxu0 0.0
  %228 = vmatpush1.msra.mxu0 0.0
  %229 = vmatprep.subr.mxu0 0.0
  %230 = vmatpush1.msra.mxu0 0.0
  %231 = vmatprep.subr.mxu0 0.0
  %232 = vmatpush1.msra.mxu0 0.0
  %233 = vmatprep.subr.mxu0 0.0
  %234 = vmatpush1.msra.mxu0 0.0
  %235 = vmatprep.subr.mxu0 0.0
  %236 = vmatpush1.msra.mxu0 0.0
  %237 = vmatprep.subr.mxu0 0.0
  %238 = vmatpush1.msra.mxu0 0.0
  %239 = vmatprep.subr.mxu0 0.0
  %240 = vmatpush1.msra.mxu0 0.0
  %241 = vmatprep.subr.mxu0 0.0
  %242 = vmatpush1.msra.mxu0 0.0
  %243 = vmatprep.subr.mxu0 0.0
  %244 = vmatpush1.msra.mxu0 0.0
  %245 = vmatprep.subr.mxu0 0.0
  %246 = vmatpush1.msra.mxu0 0.0
  %247 = vmatprep.subr.mxu0 0.0
  %248 = vmatpush1.msra.mxu0 0.0
  %249 = vmatprep.subr.mxu0 0.0
  %250 = vmatpush1.msra.mxu0 0.0
  %251 = vmatprep.subr.mxu0 0.0
  %252 = vmatpush1.msra.mxu0 0.0
  %253 = vmatprep.subr.mxu0 0.0
  %254 = vmatpush1.msra.mxu0 0.0
  %255 = vmatprep.subr.mxu0 0.0
  %256 = vmatpush1.msra.mxu0 0.0
  %257 = vmatprep.subr.mxu0 0.0
  %258 = vmatpush1.msra.mxu0 0.0
  %259 = vmatprep.mubr.f32.mxu0 0.0
  %260 = vmatmul.mubr.f32.gmra.mrb[0].mxu0 %v193
  %v261 = vpop.f32.mrb[0].mxu0
  %v262 = vadd.f32 %v189, %v261
  %v263 = vpop.f32.mrb[0].mxu0
  %264 = vdwg.mxu0
  %v265 = vmax.f32 %v262, 0.0
  %v266 = vld [vmem:[%s5] sm:$0x3]
  %v267 = vld [vmem:[%s6] sm:$0x3]
  %269 = vset.pattern.permute.xlu0 0
  %270 = vperm.xlu0 %269, %v267
  %v271 = vpop.permute.xlu0 %270
  %vm273 = vcmask 64512
  %v275 = vsel %vm273, %v266, 0
  %277 = vmatprep.subr.mxu0 0.0
  %278 = vmatpush1.msra.mxu0 %v265
  %279 = vmatprep.subr.mxu0 0.0
  %280 = vmatpush1.msra.mxu0 0.0
  %281 = vmatprep.subr.mxu0 0.0
  %282 = vmatpush1.msra.mxu0 0.0
  %283 = vmatprep.subr.mxu0 0.0
  %284 = vmatpush1.msra.mxu0 0.0
  %285 = vmatprep.subr.mxu0 0.0
  %286 = vmatpush1.msra.mxu0 0.0
  %287 = vmatprep.subr.mxu0 0.0
  %288 = vmatpush1.msra.mxu0 0.0
  %289 = vmatprep.subr.mxu0 0.0
  %290 = vmatpush1.msra.mxu0 0.0
  %291 = vmatprep.subr.mxu0 0.0
  %292 = vmatpush1.msra.mxu0 0.0
  %293 = vmatprep.subr.mxu0 0.0
  %294 = vmatpush1.msra.mxu0 0.0
  %295 = vmatprep.subr.mxu0 0.0
  %296 = vmatpush1.msra.mxu0 0.0
  %297 = vmatprep.subr.mxu0 0.0
  %298 = vmatpush1.msra.mxu0 0.0
  %299 = vmatprep.subr.mxu0 0.0
  %300 = vmatpush1.msra.mxu0 0.0
  %301 = vmatprep.subr.mxu0 0.0
  %302 = vmatpush1.msra.mxu0 0.0
  %303 = vmatprep.subr.mxu0 0.0
  %304 = vmatpush1.msra.mxu0 0.0
  %305 = vmatprep.subr.mxu0 0.0
  %306 = vmatpush1.msra.mxu0 0.0
  %307 = vmatprep.subr.mxu0 0.0
  %308 = vmatpush1.msra.mxu0 0.0
  %309 = vmatprep.subr.mxu0 0.0
  %310 = vmatpush1.msra.mxu0 0.0
  %311 = vmatprep.subr.mxu0 0.0
  %312 = vmatpush1.msra.mxu0 0.0
  %313 = vmatprep.subr.mxu0 0.0
  %314 = vmatpush1.msra.mxu0 0.0
  %315 = vmatprep.subr.mxu0 0.0
  %316 = vmatpush1.msra.mxu0 0.0
  %317 = vmatprep.subr.mxu0 0.0
  %318 = vmatpush1.msra.mxu0 0.0
  %319 = vmatprep.subr.mxu0 0.0
  %320 = vmatpush1.msra.mxu0 0.0
  %321 = vmatprep.subr.mxu0 0.0
  %322 = vmatpush1.msra.mxu0 0.0
  %323 = vmatprep.subr.mxu0 0.0
  %324 = vmatpush1.msra.mxu0 0.0
  %325 = vmatprep.subr.mxu0 0.0
  %326 = vmatpush1.msra.mxu0 0.0
  %327 = vmatprep.subr.mxu0 0.0
  %328 = vmatpush1.msra.mxu0 0.0
  %329 = vmatprep.subr.mxu0 0.0
  %330 = vmatpush1.msra.mxu0 0.0
  %331 = vmatprep.subr.mxu0 0.0
  %332 = vmatpush1.msra.mxu0 0.0
  %333 = vmatprep.subr.mxu0 0.0
  %334 = vmatpush1.msra.mxu0 0.0
  %335 = vmatprep.subr.mxu0 0.0
  %336 = vmatpush1.msra.mxu0 0.0
  %337 = vmatprep.subr.mxu0 0.0
  %338 = vmatpush1.msra.mxu0 0.0
  %339 = vmatprep.subr.mxu0 0.0
  %340 = vmatpush1.msra.mxu0 0.0
  %341 = vmatprep.mubr.f32.mxu0 0.0
  %342 = vmatmul.mubr.f32.gmra.mrb[0].mxu0 %v275
  %v343 = vpop.f32.mrb[0].mxu0
  %v344 = vadd.f32 %v271, %v343
  %v345 = vpop.f32.mrb[0].mxu0
  %346 = vdwg.mxu0
  %v348 = vrot.slane %v344, 1
  %v350 = vsub.f32 %v344, %v348
  %v351 = vsub.f32 0.0, %v350
  %v352 = vmul.f32 %v351, 1.442695
  %v353 = vpow.pop %v352
  %v354 = vadd.f32 %v353, 1.0
  %v355 = vrcp.pop %v354
  %v356 = vmul.f32 1.0, %v355
  %357 = vst [vmem:[%s7] sm:$0x1] %v356
  %v358 = vsub.f32 1.0, %v356
  %359 = vst [vmem:[%s7 + $0x1] sm:$0x1] %v358
  // Predicated region
  $region30: #{mlp_forward.1} parent=0 // pred_check
    _
  $region31: #{mlp_forward.1} parent=0 // pred_check_branch
    %361 = sbr.rel (0) target = $region33
  $region32: #{mlp_forward.1} parent=0 // pred_region
    _
  $region33: #{mlp_forward.1} parent=0 // pred_fallthru
    _
  // Predicated region
  $region34: #{mlp_forward.1} parent=0 // pred_check
    _
  $region35: #{mlp_forward.1} parent=0 // pred_check_branch
    %363 = sbr.rel (0) target = $region37
  $region36: #{mlp_forward.1} parent=0 // pred_region
    _
  $region37: #{mlp_forward.1} parent=0 // pred_fallthru
    _

</llo_original>
